<compile_context>
chip_gen: v7x
topology: tpu7x:2x2x1
jax: 0.10.0
libtpu: 0.0.40
codegen_flags: <defaults>
</compile_context>

<pallas_src>
import functools

import jax
import jax.numpy as jnp
from jax import lax
from jax.experimental import pallas as pl
from jax.experimental.pallas import tpu as pltpu


INPUT_FEATURES = 8
HIDDEN1 = 64
HIDDEN2 = 32
OUT_FEATURES = 1

LANE = 128
DEFAULT_TILE_M = 8192   # batch columns (lanes) per grid step
SUB_M = 512             # in-kernel sub-block (bounds vreg live ranges)


def _round_up(n, m):
    return ((n + m - 1) // m) * m


def _mlp_kernel(xT_ref, w1_ref, b1_ref, w2_ref, b2_ref, w3_ref, b3_ref,
                oT_ref, *, sub_m):
    # Weights/biases are tiny and VMEM-resident (constant index_map).
    w1 = w1_ref[...]   # (64, 8)   bf16
    b1 = b1_ref[...]   # (64, 1)   f32
    w2 = w2_ref[...]   # (32, 64)  bf16
    b2 = b2_ref[...]   # (32, 1)   f32
    w3 = w3_ref[...]   # (1, 32)   bf16
    b3 = b3_ref[...]   # (1, 1)    f32

    n_sub = xT_ref.shape[1] // sub_m   # static: tile is a multiple of sub_m

    def body(s, carry):
        col = pl.multiple_of(s * sub_m, LANE)
        xT = xT_ref[:, pl.ds(col, sub_m)]                       # (8, sub) bf16
        # Layer 1: Linear(8 -> 64) + ReLU   (MXU, bf16 in / f32 acc)
        h1 = jnp.dot(w1, xT, preferred_element_type=jnp.float32)
        h1 = jnp.maximum(h1 + b1, 0.0).astype(jnp.bfloat16)     # (64, sub)
        # Layer 2: Linear(64 -> 32) + ReLU  (MXU)
        h2 = jnp.dot(w2, h1, preferred_element_type=jnp.float32)
        h2 = jnp.maximum(h2 + b2, 0.0).astype(jnp.bfloat16)     # (32, sub)
        # Layer 3: Linear(32 -> 1) — 1-sublane MXU push, batch stays on lanes.
        y = jnp.dot(w3, h2, preferred_element_type=jnp.float32) + b3
        oT_ref[:, pl.ds(col, sub_m)] = y.astype(oT_ref.dtype)   # lane-dense store
        return carry

    lax.fori_loop(0, n_sub, body, 0, unroll=True)


def ann_model_forward(x, params, *, tile_m=DEFAULT_TILE_M):
    """x: [batch, 8] float32 -> [batch, 1] float32."""
    batch = x.shape[0]
    # Batch tile on the lane axis: multiple of 128; if larger than one
    # sub-block, make it a multiple of SUB_M so the inner loop tiles evenly.
    tm = min(_round_up(tile_m, LANE), _round_up(batch, LANE))
    if tm > SUB_M:
        tm = _round_up(tm, SUB_M)
    sub = min(SUB_M, tm)
    padded = _round_up(batch, tm)

    # Feature-major, bf16 matmul operand; pad the batch (lane) axis.
    xT = x.astype(jnp.bfloat16).T                      # (8, batch)
    if padded != batch:
        xT = jnp.pad(xT, ((0, 0), (0, padded - batch)))

    def const_spec(shape):
        # Whole-array block, same block every step -> stays resident in VMEM.
        return pl.BlockSpec(shape, lambda i: (0, 0))

    kernel = functools.partial(_mlp_kernel, sub_m=sub)

    yT = pl.pallas_call(
        kernel,
        out_shape=jax.ShapeDtypeStruct((OUT_FEATURES, padded), jnp.float32),
        grid=(padded // tm,),
        in_specs=[
            pl.BlockSpec((INPUT_FEATURES, tm), lambda i: (0, i)),  # xT (streamed)
            const_spec((HIDDEN1, INPUT_FEATURES)),                 # W1 [out, in]
            const_spec((HIDDEN1, 1)),                              # b1
            const_spec((HIDDEN2, HIDDEN1)),                        # W2 [out, in]
            const_spec((HIDDEN2, 1)),                              # b2
            const_spec((OUT_FEATURES, HIDDEN2)),                   # W3 [out, in]
            const_spec((OUT_FEATURES, 1)),                         # b3
        ],
        out_specs=pl.BlockSpec((OUT_FEATURES, tm), lambda i: (0, i)),
        compiler_params=pltpu.CompilerParams(
            dimension_semantics=("parallel",)),
        # TODO(synk): on v7x (2 TensorCores) split the batch grid across cores
        # explicitly (core_parallel / pl.core_map); "parallel" alone has no
        # measured effect and is a no-op on single-TC v5e/v6e.
    )(
        xT,
        params["w1T"], params["b1"],
        params["w2T"], params["b2"],
        params["w3"], params["b3"],
    )
    # Back to batch-major (batch, 1); drop padded columns.
    return yT.reshape(padded, OUT_FEATURES)[:batch]


def init_params(key):
    """Mirrors nn.Linear init U(-1/sqrt(fan_in), 1/sqrt(fan_in)).

    Weights are stored feature-major ([out, in] — nn.Linear's native layout)
    in bf16 for the MXU; biases stay f32 as [out, 1] columns.
    """
    keys = jax.random.split(key, 6)

    def linear(kw, kb, fan_in, fan_out):
        bound = 1.0 / (fan_in ** 0.5)
        w = jax.random.uniform(kw, (fan_out, fan_in), jnp.float32, -bound, bound)
        b = jax.random.uniform(kb, (fan_out, 1), jnp.float32, -bound, bound)
        return w.astype(jnp.bfloat16), b

    w1, b1 = linear(keys[0], keys[1], INPUT_FEATURES, HIDDEN1)
    w2, b2 = linear(keys[2], keys[3], HIDDEN1, HIDDEN2)
    w3, b3 = linear(keys[4], keys[5], HIDDEN2, OUT_FEATURES)
    return {"w1T": w1, "b1": b1, "w2T": w2, "b2": b2, "w3": w3, "b3": b3}


def _reference_forward(x, params):
    """Pure-JAX f32 reference (same bf16-stored weights upcast to f32)."""
    w1 = params["w1T"].astype(jnp.float32).T   # (8, 64)
    w2 = params["w2T"].astype(jnp.float32).T   # (64, 32)
    w3 = params["w3"].astype(jnp.float32).T    # (32, 1)
    h1 = jnp.maximum(x @ w1 + params["b1"].T, 0.0)
    h2 = jnp.maximum(h1 @ w2 + params["b2"].T, 0.0)
    return h2 @ w3 + params["b3"].T


if __name__ == "__main__":
    key = jax.random.PRNGKey(0)
    k_params, k_x1, k_x2 = jax.random.split(key, 3)

    params = init_params(k_params)

    # Small batch (single grid step, single sub-block).
    batch = 8
    x = jax.random.normal(k_x1, (batch, INPUT_FEATURES), jnp.float32)
    y = jax.block_until_ready(ann_model_forward(x, params))
    y_ref = _reference_forward(x, params)
    assert y.shape == (batch, OUT_FEATURES)
    # bf16 matmul operands (f32 accumulation) -> relaxed tolerance vs f32 ref.
    assert jnp.allclose(y, y_ref, atol=2e-2, rtol=2e-2), "small-batch mismatch"

    # Multi-step grid with a ragged tail (exercises tiling + padding path).
    x_big = jax.random.normal(k_x2, (300, INPUT_FEATURES), jnp.float32)
    y_big = jax.block_until_ready(ann_model_forward(x_big, params, tile_m=256))
    y_big_ref = _reference_forward(x_big, params)
    assert y_big.shape == (300, OUT_FEATURES)
    assert jnp.allclose(y_big, y_big_ref, atol=2e-2, rtol=2e-2), "tiled mismatch"

    print("KERNEL_OK")
</pallas_src>

<mosaic_0001>
module attributes {stable_mosaic.version = 11 : i64} {
  func.func @_mlp_kernel(%arg0: i32, %arg1: memref<8x128xbf16, #tpu.memory_space<vmem>>, %arg2: memref<64x8xbf16, #tpu.memory_space<vmem>>, %arg3: memref<64x1xf32, #tpu.memory_space<vmem>>, %arg4: memref<32x64xbf16, #tpu.memory_space<vmem>>, %arg5: memref<32x1xf32, #tpu.memory_space<vmem>>, %arg6: memref<1x32xbf16, #tpu.memory_space<vmem>>, %arg7: memref<1x1xf32, #tpu.memory_space<vmem>>, %arg8: memref<1x128xf32, #tpu.memory_space<vmem>>) attributes {dimension_semantics = [#tpu.dimension_semantics<parallel>], iteration_bounds = array<i64: 1>, scalar_prefetch = 0 : i64, scratch_operands = 0 : i64, tpu.core_type = #tpu.core_type<tc>, window_params = [{transform_indices = @transform_0, window_bounds = array<i64: 8, 128>}, {pipeline_mode = #tpu.pipeline_mode<synchronous>, transform_indices = @transform_1, window_bounds = array<i64: 64, 8>}, {pipeline_mode = #tpu.pipeline_mode<synchronous>, transform_indices = @transform_2, window_bounds = array<i64: 64, 1>}, {pipeline_mode = #tpu.pipeline_mode<synchronous>, transform_indices = @transform_3, window_bounds = array<i64: 32, 64>}, {pipeline_mode = #tpu.pipeline_mode<synchronous>, transform_indices = @transform_4, window_bounds = array<i64: 32, 1>}, {pipeline_mode = #tpu.pipeline_mode<synchronous>, transform_indices = @transform_5, window_bounds = array<i64: 1, 32>}, {pipeline_mode = #tpu.pipeline_mode<synchronous>, transform_indices = @transform_6, window_bounds = array<i64: 1, 1>}, {transform_indices = @transform_7, window_bounds = array<i64: 1, 128>}]} {
    %c0 = arith.constant 0 : index
    %c0_0 = arith.constant 0 : index
    %0 = vector.load %arg2[%c0, %c0_0] : memref<64x8xbf16, #tpu.memory_space<vmem>>, vector<64x8xbf16>
    %c0_1 = arith.constant 0 : index
    %c0_2 = arith.constant 0 : index
    %1 = vector.load %arg3[%c0_1, %c0_2] : memref<64x1xf32, #tpu.memory_space<vmem>>, vector<64x1xf32>
    %c0_3 = arith.constant 0 : index
    %c0_4 = arith.constant 0 : index
    %2 = vector.load %arg4[%c0_3, %c0_4] : memref<32x64xbf16, #tpu.memory_space<vmem>>, vector<32x64xbf16>
    %c0_5 = arith.constant 0 : index
    %c0_6 = arith.constant 0 : index
    %3 = vector.load %arg5[%c0_5, %c0_6] : memref<32x1xf32, #tpu.memory_space<vmem>>, vector<32x1xf32>
    %c0_7 = arith.constant 0 : index
    %c0_8 = arith.constant 0 : index
    %4 = vector.load %arg6[%c0_7, %c0_8] : memref<1x32xbf16, #tpu.memory_space<vmem>>, vector<1x32xbf16>
    %c0_9 = arith.constant 0 : index
    %c0_10 = arith.constant 0 : index
    %5 = vector.load %arg7[%c0_9, %c0_10] : memref<1x1xf32, #tpu.memory_space<vmem>>, vector<1x1xf32>
    %c0_i32 = arith.constant 0 : i32
    %c128_i32 = arith.constant 128 : i32
    %6 = arith.muli %c0_i32, %c128_i32 : i32
    %7 = tpu.assume_multiple %6, 128 : i32
    %c0_11 = arith.constant 0 : index
    %8 = arith.index_cast %7 : i32 to index
    %9 = vector.load %arg1[%c0_11, %8] : memref<8x128xbf16, #tpu.memory_space<vmem>>, vector<8x128xbf16>
    %cst = arith.constant dense<0.000000e+00> : vector<64x128xf32>
    %10 = tpu.matmul %0, %9, %cst {dimension_numbers = #tpu.dot_dimension_numbers<[1], [0], [0], [1], [0, 0, 1, 1], [], []>} : vector<64x8xbf16>, vector<8x128xbf16>, vector<64x128xf32> -> vector<64x128xf32>
    %11 = vector.broadcast %1 : vector<64x1xf32> to vector<64x128xf32>
    %12 = arith.addf %10, %11 : vector<64x128xf32>
    %cst_12 = arith.constant 0.000000e+00 : f32
    %13 = vector.broadcast %cst_12 : f32 to vector<64x128xf32>
    %14 = arith.maximumf %12, %13 : vector<64x128xf32>
    %15 = arith.truncf %14 : vector<64x128xf32> to vector<64x128xbf16>
    %cst_13 = arith.constant dense<0.000000e+00> : vector<32x128xf32>
    %16 = tpu.matmul %2, %15, %cst_13 {dimension_numbers = #tpu.dot_dimension_numbers<[1], [0], [0], [1], [0, 0, 1, 1], [], []>} : vector<32x64xbf16>, vector<64x128xbf16>, vector<32x128xf32> -> vector<32x128xf32>
    %17 = vector.broadcast %3 : vector<32x1xf32> to vector<32x128xf32>
    %18 = arith.addf %16, %17 : vector<32x128xf32>
    %cst_14 = arith.constant 0.000000e+00 : f32
    %19 = vector.broadcast %cst_14 : f32 to vector<32x128xf32>
    %20 = arith.maximumf %18, %19 : vector<32x128xf32>
    %21 = arith.truncf %20 : vector<32x128xf32> to vector<32x128xbf16>
    %cst_15 = arith.constant dense<0.000000e+00> : vector<1x128xf32>
    %22 = tpu.matmul %4, %21, %cst_15 {dimension_numbers = #tpu.dot_dimension_numbers<[1], [0], [0], [1], [0, 0, 1, 1], [], []>} : vector<1x32xbf16>, vector<32x128xbf16>, vector<1x128xf32> -> vector<1x128xf32>
    %23 = vector.broadcast %5 : vector<1x1xf32> to vector<1x128xf32>
    %24 = arith.addf %22, %23 : vector<1x128xf32>
    %c0_16 = arith.constant 0 : index
    %25 = arith.index_cast %7 : i32 to index
    %26 = vector.load %arg8[%c0_16, %25] : memref<1x128xf32, #tpu.memory_space<vmem>>, vector<1x128xf32>
    tpu.vector_store %arg8[%c0_16, %25], %24 {strides = array<i32>} : memref<1x128xf32, #tpu.memory_space<vmem>>, vector<1x128xf32>,
    %c1_i32 = arith.constant 1 : i32
    return
  }
  func.func @transform_0(%arg0: i32) -> (i32, i32) {
    %c0_i32 = arith.constant 0 : i32
    %c0_i32_0 = arith.constant 0 : i32
    return %c0_i32, %arg0 : i32, i32
  }
  func.func @transform_1(%arg0: i32) -> (i32, i32) {
    %c0_i32 = arith.constant 0 : i32
    %c0_i32_0 = arith.constant 0 : i32
    %c0_i32_1 = arith.constant 0 : i32
    return %c0_i32, %c0_i32_0 : i32, i32
  }
  func.func @transform_2(%arg0: i32) -> (i32, i32) {
    %c0_i32 = arith.constant 0 : i32
    %c0_i32_0 = arith.constant 0 : i32
    %c0_i32_1 = arith.constant 0 : i32
    return %c0_i32, %c0_i32_0 : i32, i32
  }
  func.func @transform_3(%arg0: i32) -> (i32, i32) {
    %c0_i32 = arith.constant 0 : i32
    %c0_i32_0 = arith.constant 0 : i32
    %c0_i32_1 = arith.constant 0 : i32
    return %c0_i32, %c0_i32_0 : i32, i32
  }
  func.func @transform_4(%arg0: i32) -> (i32, i32) {
    %c0_i32 = arith.constant 0 : i32
    %c0_i32_0 = arith.constant 0 : i32
    %c0_i32_1 = arith.constant 0 : i32
    return %c0_i32, %c0_i32_0 : i32, i32
  }
  func.func @transform_5(%arg0: i32) -> (i32, i32) {
    %c0_i32 = arith.constant 0 : i32
    %c0_i32_0 = arith.constant 0 : i32
    %c0_i32_1 = arith.constant 0 : i32
    return %c0_i32, %c0_i32_0 : i32, i32
  }
  func.func @transform_6(%arg0: i32) -> (i32, i32) {
    %c0_i32 = arith.constant 0 : i32
    %c0_i32_0 = arith.constant 0 : i32
    %c0_i32_1 = arith.constant 0 : i32
    return %c0_i32, %c0_i32_0 : i32, i32
  }
  func.func @transform_7(%arg0: i32) -> (i32, i32) {
    %c0_i32 = arith.constant 0 : i32
    %c0_i32_0 = arith.constant 0 : i32
    return %c0_i32, %arg0 : i32, i32
  }
}

</mosaic_0001>

<llo_original>
// kernel: tpu_custom_call.1
$region0: #{tpu_custom_call.1}
  #allocation0 [shape = 'u32[]', space=smem, size = 0x4, offset = 0x4, fixed_abs, tag = 'smem constant byte address 0x4 - core index']
  #allocation1 [shape = 'u32[144,128]{1,0:T(1,128)}', space=vmem, size = 0x12000, scoped, tag = 'internal scratch']
  #allocation2 [shape = 'f32[1,1]{1,0:T(1,128)S(1)}', space=vmem, size = 0x200, scoped, tag = 'scoped memory for tpu_custom_call.1']
  %s0 = inlined_call_operand.vmem [shape: bf16[8,128], index: 0, kind: input, shape index: {}]
  %s1 = inlined_call_operand.vmem [shape: bf16[64,8], index: 1, kind: input, shape index: {}]
  %s2 = inlined_call_operand.vmem [shape: f32[64,1], index: 2, kind: input, shape index: {}]
  %s3 = inlined_call_operand.vmem [shape: bf16[32,64], index: 3, kind: input, shape index: {}]
  %s4 = inlined_call_operand.vmem [shape: f32[32,1], index: 4, kind: input, shape index: {}]
  %s5 = inlined_call_operand.vmem [shape: bf16[1,32], index: 5, kind: input, shape index: {}]
  %s6 = inlined_call_operand.<no memory space> [shape: f32[1,1], index: 6, kind: input, shape index: {}]
  %s7 = inlined_call_operand.hbm [shape: f32[1,128], index: 7, kind: output, shape index: {}]
  %s8 = sld [smem:[#allocation0]]
  $region38: #{tpu_custom_call.1} parent=0
    _
  %s10 = ssub.s32 1, %s8
  %s11 = scalar_select 0, %s10, %s8
  %v12 = vstv %s6
  %13 = vst [vmem:[#allocation2] sm:$0x1] %v12
  $region1: #{tpu_custom_call.1} parent=0
    #allocation3 [shape = 'u8[512]{0}', space=vmem, size = 0x400, scoped, tag = 'output window, operand 0, single buffered']
    #allocation4 [shape = 's32[1]{0}', space=sflag, size = 0x4, scoped, tag = 'scoped memory for tpu_custom_call.1']
    %14 = vsyncpa [#allocation4], 0
    // Predicated region
    $region2: #{tpu_custom_call.1} parent=1 // pred_check
      _
    $region3: #{tpu_custom_call.1} parent=1 // pred_check_branch
      %16 = sbr.rel (0) target = $region5
    $region4: #{tpu_custom_call.1} parent=1 // pred_region
      _
    $region5: #{tpu_custom_call.1} parent=1 // pred_fallthru
      _
    // Predicated region
    $region6: #{tpu_custom_call.1} parent=1 // pred_check
      _
    $region7: #{tpu_custom_call.1} parent=1 // pred_check_branch
      %18 = sbr.rel (0) target = $region9
    $region8: #{tpu_custom_call.1} parent=1 // pred_region
      _
    $region9: #{tpu_custom_call.1} parent=1 // pred_fallthru
      _
    // Predicated region
    $region10: #{tpu_custom_call.1} parent=1 // pred_check
      _
    $region11: #{tpu_custom_call.1} parent=1 // pred_check_branch
      %20 = sbr.rel (0) target = $region13
    $region12: #{tpu_custom_call.1} parent=1 // pred_region
      _
    $region13: #{tpu_custom_call.1} parent=1 // pred_fallthru
      _
    // Predicated region
    $region14: #{tpu_custom_call.1} parent=1 // pred_check
      _
    $region15: #{tpu_custom_call.1} parent=1 // pred_check_branch
      %22 = sbr.rel (0) target = $region17
    $region16: #{tpu_custom_call.1} parent=1 // pred_region
      _
    $region17: #{tpu_custom_call.1} parent=1 // pred_fallthru
      _
    // Predicated region
    $region18: #{tpu_custom_call.1} parent=1 // pred_check
      _
    $region19: #{tpu_custom_call.1} parent=1 // pred_check_branch
      %24 = sbr.rel (0) target = $region21
    $region20: #{tpu_custom_call.1} parent=1 // pred_region
      _
    $region21: #{tpu_custom_call.1} parent=1 // pred_fallthru
      _
    // Predicated region
    $region22: #{tpu_custom_call.1} parent=1 // pred_check
      _
    $region23: #{tpu_custom_call.1} parent=1 // pred_check_branch
      %26 = sbr.rel (0) target = $region25
    $region24: #{tpu_custom_call.1} parent=1 // pred_region
      _
    $region25: #{tpu_custom_call.1} parent=1 // pred_fallthru
      _
    // Predicated region
    $region26: #{tpu_custom_call.1} parent=1 // pred_check
      _
    $region27: #{tpu_custom_call.1} parent=1 // pred_check_branch
      %28 = sbr.rel (0) target = $region29
    $region28: #{tpu_custom_call.1} parent=1 // pred_region
      _
    $region29: #{tpu_custom_call.1} parent=1 // pred_fallthru
      _
    %v30 = vld [vmem:[%s1] sm:$0xf]
    %v31 = vld [vmem:[%s1 + $0x4] sm:$0xf]
    %v32 = vld [vmem:[%s1 + $0x8] sm:$0xf]
    %v33 = vld [vmem:[%s1 + $0xc] sm:$0xf]
    %v34 = vld [vmem:[%s1 + $0x10] sm:$0xf]
    %v35 = vld [vmem:[%s1 + $0x14] sm:$0xf]
    %v36 = vld [vmem:[%s1 + $0x18] sm:$0xf]
    %v37 = vld [vmem:[%s1 + $0x1c] sm:$0xf]
    %v38 = vld [vmem:[%s2] sm:$0xff]
    %v39 = vld [vmem:[%s2 + $0x8] sm:$0xff]
    %v40 = vld [vmem:[%s2 + $0x10] sm:$0xff]
    %v41 = vld [vmem:[%s2 + $0x18] sm:$0xff]
    %v42 = vld [vmem:[%s2 + $0x20] sm:$0xff]
    %v43 = vld [vmem:[%s2 + $0x28] sm:$0xff]
    %v44 = vld [vmem:[%s2 + $0x30] sm:$0xff]
    %v45 = vld [vmem:[%s2 + $0x38] sm:$0xff]
    %v46 = vld [vmem:[%s3] sm:$0xf]
    %v47 = vld [vmem:[%s3 + $0x4] sm:$0xf]
    %v48 = vld [vmem:[%s3 + $0x8] sm:$0xf]
    %v49 = vld [vmem:[%s3 + $0xc] sm:$0xf]
    %v50 = vld [vmem:[%s4] sm:$0xff]
    %v51 = vld [vmem:[%s4 + $0x8] sm:$0xff]
    %v52 = vld [vmem:[%s4 + $0x10] sm:$0xff]
    %v53 = vld [vmem:[%s4 + $0x18] sm:$0xff]
    %v54 = vld [vmem:[%s5] sm:$0x1]
    %v55 = vld [vmem:[#allocation2] sm:$0x1]
    %v56 = vld [vmem:[%s0] sm:$0xf]
    %58 = vset.pattern.permute.xlu0 0
    %59 = vperm.xlu0 %58, %v38
    %v60 = vpop.permute.xlu0 %59
    %63 = vset.pattern.permute.xlu0 0
    %64 = vperm.xlu0 %63, %v39
    %v65 = vpop.permute.xlu0 %64
    %68 = vset.pattern.permute.xlu0 0
    %69 = vperm.xlu0 %68, %v40
    %v70 = vpop.permute.xlu0 %69
    %73 = vset.pattern.permute.xlu0 0
    %74 = vperm.xlu0 %73, %v41
    %v75 = vpop.permute.xlu0 %74
    %78 = vset.pattern.permute.xlu0 0
    %79 = vperm.xlu0 %78, %v42
    %v80 = vpop.permute.xlu0 %79
    %83 = vset.pattern.permute.xlu0 0
    %84 = vperm.xlu0 %83, %v43
    %v85 = vpop.permute.xlu0 %84
    %88 = vset.pattern.permute.xlu0 0
    %89 = vperm.xlu0 %88, %v44
    %v90 = vpop.permute.xlu0 %89
    %93 = vset.pattern.permute.xlu0 0
    %94 = vperm.xlu0 %93, %v45
    %v95 = vpop.permute.xlu0 %94
    %v105 = vunpack.c.l.b16 %v30
    %v106 = vunpack.c.l.b16 %v31
    %v107 = vunpack.c.l.b16 %v32
    %v108 = vunpack.c.l.b16 %v33
    %v109 = vunpack.c.l.b16 %v34
    %v110 = vunpack.c.l.b16 %v35
    %v111 = vunpack.c.l.b16 %v36
    %v112 = vunpack.c.l.b16 %v37
    %v113 = vpack.c.b16 %v106, %v105
    %v114 = vpack.c.b16 %v108, %v107
    %v115 = vpack.c.b16 %v110, %v109
    %v116 = vpack.c.b16 %v112, %v111
    %vm117 = vcmask 64512
    %v119 = vsel %vm117, %v113, 0
    %v122 = vsel %vm117, %v114, 0
    %v125 = vsel %vm117, %v115, 0
    %v128 = vsel %vm117, %v116, 0
    %vm130 = vcmask 1043456
    %v132 = vsel %vm130, %v56, 0
    %134 = vmatprep.subr.bf16.mxu0 0
    %135 = vmatpush1.bf16.msra.mxu0 %v132
    %136 = vmatprep.subr.bf16.mxu0 0
    %137 = vmatpush1.bf16.msra.mxu0 0
    %138 = vmatprep.subr.bf16.mxu0 0
    %139 = vmatpush1.bf16.msra.mxu0 0
    %140 = vmatprep.subr.bf16.mxu0 0
    %141 = vmatpush1.bf16.msra.mxu0 0
    %142 = vmatprep.subr.bf16.mxu0 0
    %143 = vmatpush1.bf16.msra.mxu0 0
    %144 = vmatprep.subr.bf16.mxu0 0
    %145 = vmatpush1.bf16.msra.mxu0 0
    %146 = vmatprep.subr.bf16.mxu0 0
    %147 = vmatpush1.bf16.msra.mxu0 0
    %148 = vmatprep.subr.bf16.mxu0 0
    %149 = vmatpush1.bf16.msra.mxu0 0
    %150 = vmatprep.subr.bf16.mxu0 0
    %151 = vmatpush1.bf16.msra.mxu0 0
    %152 = vmatprep.subr.bf16.mxu0 0
    %153 = vmatpush1.bf16.msra.mxu0 0
    %154 = vmatprep.subr.bf16.mxu0 0
    %155 = vmatpush1.bf16.msra.mxu0 0
    %156 = vmatprep.subr.bf16.mxu0 0
    %157 = vmatpush1.bf16.msra.mxu0 0
    %158 = vmatprep.subr.bf16.mxu0 0
    %159 = vmatpush1.bf16.msra.mxu0 0
    %160 = vmatprep.subr.bf16.mxu0 0
    %161 = vmatpush1.bf16.msra.mxu0 0
    %162 = vmatprep.subr.bf16.mxu0 0
    %163 = vmatpush1.bf16.msra.mxu0 0
    %164 = vmatprep.subr.bf16.mxu0 0
    %165 = vmatpush1.bf16.msra.mxu0 0
    %166 = vmatprep.mubr.bf16.mxu0 0
    %167 = vmatmul.mubr.bf16.gmra.mrb[0].mxu0 %v119
    %v168 = vpop.f32.mrb[0].mxu0
    %v169 = vadd.f32 %v60, %v168
    %v170 = vpop.f32.mrb[0].mxu0
    %v171 = vpop.f32.mrb[0].mxu0
    %v172 = vadd.f32 %v65, %v171
    %v173 = vpop.f32.mrb[0].mxu0
    %174 = vmatprep.mubr.bf16.mxu0 0
    %175 = vmatmul.mubr.bf16.gmra.mrb[0].mxu0 %v122
    %v176 = vpop.f32.mrb[0].mxu0
    %v177 = vadd.f32 %v70, %v176
    %v178 = vpop.f32.mrb[0].mxu0
    %v179 = vpop.f32.mrb[0].mxu0
    %v180 = vadd.f32 %v75, %v179
    %v181 = vpop.f32.mrb[0].mxu0
    %182 = vmatprep.mubr.bf16.mxu0 0
    %183 = vmatmul.mubr.bf16.gmra.mrb[0].mxu0 %v125
    %v184 = vpop.f32.mrb[0].mxu0
    %v185 = vadd.f32 %v80, %v184
    %v186 = vpop.f32.mrb[0].mxu0
    %v187 = vpop.f32.mrb[0].mxu0
    %v188 = vadd.f32 %v85, %v187
    %v189 = vpop.f32.mrb[0].mxu0
    %190 = vmatprep.mubr.bf16.mxu0 0
    %191 = vmatmul.mubr.bf16.gmra.mrb[0].mxu0 %v128
    %v192 = vpop.f32.mrb[0].mxu0
    %v193 = vadd.f32 %v90, %v192
    %v194 = vpop.f32.mrb[0].mxu0
    %v195 = vpop.f32.mrb[0].mxu0
    %v196 = vadd.f32 %v95, %v195
    %v197 = vpop.f32.mrb[0].mxu0
    %198 = vdwg.mxu0
    %v199 = vmax.f32 %v169, 0.0
    %v200 = vmax.f32 %v172, 0.0
    %v201 = vmax.f32 %v177, 0.0
    %v202 = vmax.f32 %v180, 0.0
    %v203 = vmax.f32 %v185, 0.0
    %v204 = vmax.f32 %v188, 0.0
    %v205 = vmax.f32 %v193, 0.0
    %v206 = vmax.f32 %v196, 0.0
    %v207 = vpack.c.bf16 %v200, %v199
    %v208 = vpack.c.bf16 %v202, %v201
    %v209 = vpack.c.bf16 %v204, %v203
    %v210 = vpack.c.bf16 %v206, %v205
    %212 = vset.pattern.permute.xlu0 0
    %213 = vperm.xlu0 %212, %v50
    %v214 = vpop.permute.xlu0 %213
    %217 = vset.pattern.permute.xlu0 0
    %218 = vperm.xlu0 %217, %v51
    %v219 = vpop.permute.xlu0 %218
    %222 = vset.pattern.permute.xlu0 0
    %223 = vperm.xlu0 %222, %v52
    %v224 = vpop.permute.xlu0 %223
    %227 = vset.pattern.permute.xlu0 0
    %228 = vperm.xlu0 %227, %v53
    %v229 = vpop.permute.xlu0 %228
    %v235 = vunpack.c.l.b16 %v46
    %v236 = vunpack.c.l.b16 %v47
    %v237 = vunpack.c.l.b16 %v48
    %v238 = vunpack.c.l.b16 %v49
    %v239 = vpack.c.b16 %v236, %v235
    %v240 = vpack.c.b16 %v238, %v237
    %vm241 = vcmask 523264
    %v243 = vsel %vm241, %v239, 0
    %v246 = vsel %vm241, %v240, 0
    %248 = vmatprep.subr.bf16.mxu0 0
    %249 = vmatpush1.bf16.msra.mxu0 %v207
    %250 = vmatprep.subr.bf16.mxu0 0
    %251 = vmatpush1.bf16.msra.mxu0 %v208
    %252 = vmatprep.subr.bf16.mxu0 0
    %253 = vmatpush1.bf16.msra.mxu0 %v209
    %254 = vmatprep.subr.bf16.mxu0 0
    %255 = vmatpush1.bf16.msra.mxu0 %v210
    %256 = vmatprep.subr.bf16.mxu0 0
    %257 = vmatpush1.bf16.msra.mxu0 0
    %258 = vmatprep.subr.bf16.mxu0 0
    %259 = vmatpush1.bf16.msra.mxu0 0
    %260 = vmatprep.subr.bf16.mxu0 0
    %261 = vmatpush1.bf16.msra.mxu0 0
    %262 = vmatprep.subr.bf16.mxu0 0
    %263 = vmatpush1.bf16.msra.mxu0 0
    %264 = vmatprep.subr.bf16.mxu0 0
    %265 = vmatpush1.bf16.msra.mxu0 0
    %266 = vmatprep.subr.bf16.mxu0 0
    %267 = vmatpush1.bf16.msra.mxu0 0
    %268 = vmatprep.subr.bf16.mxu0 0
    %269 = vmatpush1.bf16.msra.mxu0 0
    %270 = vmatprep.subr.bf16.mxu0 0
    %271 = vmatpush1.bf16.msra.mxu0 0
    %272 = vmatprep.subr.bf16.mxu0 0
    %273 = vmatpush1.bf16.msra.mxu0 0
    %274 = vmatprep.subr.bf16.mxu0 0
    %275 = vmatpush1.bf16.msra.mxu0 0
    %276 = vmatprep.subr.bf16.mxu0 0
    %277 = vmatpush1.bf16.msra.mxu0 0
    %278 = vmatprep.subr.bf16.mxu0 0
    %279 = vmatpush1.bf16.msra.mxu0 0
    %280 = vmatprep.mubr.bf16.mxu0 0
    %281 = vmatmul.mubr.bf16.gmra.mrb[0].mxu0 %v243
    %v282 = vpop.f32.mrb[0].mxu0
    %v283 = vadd.f32 %v214, %v282
    %v284 = vpop.f32.mrb[0].mxu0
    %v285 = vpop.f32.mrb[0].mxu0
    %v286 = vadd.f32 %v219, %v285
    %v287 = vpop.f32.mrb[0].mxu0
    %288 = vmatprep.mubr.bf16.mxu0 0
    %289 = vmatmul.mubr.bf16.gmra.mrb[0].mxu0 %v246
    %v290 = vpop.f32.mrb[0].mxu0
    %v291 = vadd.f32 %v224, %v290
    %v292 = vpop.f32.mrb[0].mxu0
    %v293 = vpop.f32.mrb[0].mxu0
    %v294 = vadd.f32 %v229, %v293
    %v295 = vpop.f32.mrb[0].mxu0
    %296 = vdwg.mxu0
    %v297 = vmax.f32 %v283, 0.0
    %v298 = vmax.f32 %v286, 0.0
    %v299 = vmax.f32 %v291, 0.0
    %v300 = vmax.f32 %v294, 0.0
    %v301 = vpack.c.bf16 %v298, %v297
    %v302 = vpack.c.bf16 %v300, %v299
    %304 = vset.pattern.permute.xlu0 0
    %305 = vperm.xlu0 %304, %v55
    %v306 = vpop.permute.xlu0 %305
    %v308 = vlaneseq
    %v309 = vshrl.u32 %v308, 7
    %v310 = vsub.s32 0, %v309
    %v311 = vrot.slane %v306, %v310
    %vm312 = vcmask 261120
    %v314 = vsel %vm312, %v54, 0
    %316 = vmatprep.subr.bf16.mxu0 0
    %317 = vmatpush1.bf16.msra.mxu0 %v301
    %318 = vmatprep.subr.bf16.mxu0 0
    %319 = vmatpush1.bf16.msra.mxu0 %v302
    %320 = vmatprep.subr.bf16.mxu0 0
    %321 = vmatpush1.bf16.msra.mxu0 0
    %322 = vmatprep.subr.bf16.mxu0 0
    %323 = vmatpush1.bf16.msra.mxu0 0
    %324 = vmatprep.subr.bf16.mxu0 0
    %325 = vmatpush1.bf16.msra.mxu0 0
    %326 = vmatprep.subr.bf16.mxu0 0
    %327 = vmatpush1.bf16.msra.mxu0 0
    %328 = vmatprep.subr.bf16.mxu0 0
    %329 = vmatpush1.bf16.msra.mxu0 0
    %330 = vmatprep.subr.bf16.mxu0 0
    %331 = vmatpush1.bf16.msra.mxu0 0
    %332 = vmatprep.subr.bf16.mxu0 0
    %333 = vmatpush1.bf16.msra.mxu0 0
    %334 = vmatprep.subr.bf16.mxu0 0
    %335 = vmatpush1.bf16.msra.mxu0 0
    %336 = vmatprep.subr.bf16.mxu0 0
    %337 = vmatpush1.bf16.msra.mxu0 0
    %338 = vmatprep.subr.bf16.mxu0 0
    %339 = vmatpush1.bf16.msra.mxu0 0
    %340 = vmatprep.subr.bf16.mxu0 0
    %341 = vmatpush1.bf16.msra.mxu0 0
    %342 = vmatprep.subr.bf16.mxu0 0
    %343 = vmatpush1.bf16.msra.mxu0 0
    %344 = vmatprep.subr.bf16.mxu0 0
    %345 = vmatpush1.bf16.msra.mxu0 0
    %346 = vmatprep.subr.bf16.mxu0 0
    %347 = vmatpush1.bf16.msra.mxu0 0
    %348 = vmatprep.mubr.bf16.mxu0 0
    %349 = vmatmul.mubr.bf16.gmra.mrb[0].mxu0 %v314
    %v350 = vpop.f32.mrb[0].mxu0
    %v351 = vadd.f32 %v311, %v350
    %v352 = vpop.f32.mrb[0].mxu0
    %v353 = vpop.f32.mrb[0].mxu0
    %v354 = vpop.f32.mrb[0].mxu0
    %355 = vdwg.mxu0
    %356 = vst [vmem:[#allocation3] sm:$0x1] %v351
    // Predicated region
    $region30: #{tpu_custom_call.1} parent=1 // pred_check
      _
    $region31: #{tpu_custom_call.1} parent=1 // pred_check_branch
      %358 = sbr.rel (0) target = $region33
    $region32: #{tpu_custom_call.1} parent=1 // pred_region
      %s360 = ssub.s32 16, 16
      %361 = vsyncadd [#allocation4], %s360
      %s363 = sshll.u32 [#allocation3], 4
      %s364 = int_to_ptr.vmem [resolvable:$true] %s363
      %366 = dma.vmem_to_hbm [thread:$0]  %s364, 16, %s7, [#allocation4]
    $region33: #{tpu_custom_call.1} parent=1 // pred_fallthru
      _
    // Predicated region
    $region34: #{tpu_custom_call.1} parent=1 // pred_check
      _
    $region35: #{tpu_custom_call.1} parent=1 // pred_check_branch
      %368 = sbr.rel (0) target = $region37
    $region36: #{tpu_custom_call.1} parent=1 // pred_region
      %369 = dma.done [#allocation4], 16
    $region37: #{tpu_custom_call.1} parent=1 // pred_fallthru
      _
    %370 = vsyncpa [#allocation4], 1

</llo_original>
